<compile_context>
chip_gen: v6e
topology: v6e:2x2x1
jax: 0.10.0
libtpu: 0.0.40
codegen_flags: <defaults>
</compile_context>

<pallas_src>
from functools import partial

import jax
import jax.numpy as jnp
from jax.experimental import pallas as pl
from jax.experimental.pallas import tpu as pltpu


# ----------------------------------------------------------------------------
# Fused Pallas kernel
# ----------------------------------------------------------------------------

def _fused_vit_frontend_kernel(x_ref, w4_ref, b4_ref, g1_ref, b1_ref,
                               pm_w_ref, g2_ref, b2_ref, o_ref):
    # x_ref : (tm, 4K) bf16 — each row holds the 4 merge-neighbor patches (x0..x3)
    # w4_ref: (4K, 4E) bf16 block-diagonal patch-embed weight
    # 1) Conv3d-as-matmul; block-diagonal weight => output lanes are already the
    #    torch.cat([x0, x1, x2, x3], -1) PatchMerging layout.  Stays in f32.
    t = jnp.dot(x_ref[...], w4_ref[...], preferred_element_type=jnp.float32)
    t = t + b4_ref[...]

    # 2) PatchMerging3D LayerNorm(4E)  (statistics in f32)
    mu = jnp.mean(t, axis=-1, keepdims=True)
    var = jnp.mean(jnp.square(t - mu), axis=-1, keepdims=True)
    y = (t - mu) * jax.lax.rsqrt(var + 1e-5) * g1_ref[...] + b1_ref[...]

    # 3) Linear(4E, 2E, bias=False)  (bf16 MXU operands, f32 accumulation)
    z = jnp.dot(y.astype(pm_w_ref.dtype), pm_w_ref[...],
                preferred_element_type=jnp.float32)

    # 4) Dropout (identity in eval) + final LayerNorm(d_model)
    mu2 = jnp.mean(z, axis=-1, keepdims=True)
    var2 = jnp.mean(jnp.square(z - mu2), axis=-1, keepdims=True)
    zn = (z - mu2) * jax.lax.rsqrt(var2 + 1e-5)
    o_ref[...] = (zn * g2_ref[...] + b2_ref[...]).astype(o_ref.dtype)


# ----------------------------------------------------------------------------
# Tiling helpers (VMEM-budget driven, derived from the actual chip)
# ----------------------------------------------------------------------------

def _vmem_caps():
    cap = 64 * 1024 * 1024                       # conservative fallback (v7x per-TC)
    try:
        info = pltpu.get_tpu_info()
        cap = int(getattr(info, "vmem_capacity_bytes", cap)) or cap
    except Exception:
        pass
    budget = int(cap * 0.40)                     # activation-tile budget
    limit = int(cap * 0.75)                      # explicit scoped VMEM limit
    return budget, limit


def _pick_row_tile(M, in_row_bytes, out_row_bytes, fixed_bytes, budget, target=1024):
    """Row tile: as large as fits double-buffered in the budget, capped at `target`,
    multiple of 16 (bf16 sublane packing; keeps 4-neighbor groups intact), with an
    even, >=4-step grid when M allows (v7x shards the parallel axis over 2 TCs)."""
    if M <= 16:
        return int(M)                            # block == full array dim (always legal)
    per_row = 2 * (in_row_bytes + out_row_bytes)
    avail = max(budget - fixed_bytes, per_row * 16)
    cap = max(16, min(target, avail // per_row))
    min_steps = 4 if M >= 4 * 16 else 2
    steps = max(min_steps, pl.cdiv(M, cap))
    if steps > 2 and steps % 2:
        steps += 1                               # even step count -> balanced v7x TCs
    cap = min(cap, pl.cdiv(M, steps))
    tm = max(16, (min(cap, M) // 16) * 16)
    return int(tm)


# ----------------------------------------------------------------------------
# pallas_call wrapper
# ----------------------------------------------------------------------------

def pallas_vit_frontend(x4, w4, b4, g1, b1, pm_w, g2, b2):
    """Fused patch-embed + PatchMerging + final LayerNorm.
    x4: (M', 4K) bf16 tokens in merge order; w4: (4K, 4E) bf16 block-diag conv weight;
    pm_w: (4E, d_model) bf16; LN params f32.  Returns (M', d_model) f32."""
    M, K4 = x4.shape
    E4 = w4.shape[1]
    N = pm_w.shape[1]

    budget, vmem_limit = _vmem_caps()
    in_row = K4 * x4.dtype.itemsize + E4 * 8 + N * 4       # input block + live temps
    out_row = N * 4                                         # f32 output block
    fixed = 2 * (K4 * E4 * w4.dtype.itemsize + E4 * N * pm_w.dtype.itemsize
                 + (3 * E4 + 2 * N) * 4)                    # (double-buffered) params
    tm = _pick_row_tile(M, in_row, out_row, fixed, budget)
    grid = pl.cdiv(M, tm)

    return pl.pallas_call(
        _fused_vit_frontend_kernel,
        out_shape=jax.ShapeDtypeStruct((M, N), jnp.float32),
        grid_spec=pltpu.PrefetchScalarGridSpec(
            num_scalar_prefetch=0,
            grid=(grid,),
            in_specs=[pl.BlockSpec((tm, K4), lambda i: (i, 0)),
                      pl.BlockSpec((K4, E4), lambda i: (0, 0)),
                      pl.BlockSpec((1, E4), lambda i: (0, 0)),
                      pl.BlockSpec((1, E4), lambda i: (0, 0)),
                      pl.BlockSpec((1, E4), lambda i: (0, 0)),
                      pl.BlockSpec((E4, N), lambda i: (0, 0)),
                      pl.BlockSpec((1, N), lambda i: (0, 0)),
                      pl.BlockSpec((1, N), lambda i: (0, 0))],
            out_specs=pl.BlockSpec((tm, N), lambda i: (i, 0))),
        compiler_params=pltpu.CompilerParams(
            dimension_semantics=("parallel",),
            vmem_limit_bytes=vmem_limit),
    )(x4, w4, b4, g1, b1, pm_w, g2, b2)


# ----------------------------------------------------------------------------
# VisionTransformer forward (relayout fused under jit, hot path in one Pallas call)
# ----------------------------------------------------------------------------

@partial(jax.jit, static_argnums=(2,))
def vision_transformer_forward(im, params, patch_size):
    B, C, D, H, W = im.shape
    PS = patch_size
    nD, nH, nW = D // PS, H // PS, W // PS
    nH2, nW2 = nH // 2, nW // 2

    # Patch extraction in "merge order": for merged position (b, d, h2, w2) the 4K
    # columns are ordered (g, c, pd, ph, pw) with g = (x0, x1, x2, x3) =
    # ((h even,w even),(h odd,w even),(h even,w odd),(h odd,w odd)) — exactly the
    # PatchMerging3D concat order, and the inner K in Conv3d (C,kD,kH,kW) order.
    # The bf16 cast is chained directly so XLA fuses it into the transpose copy
    # (only bf16 bytes are written to HBM).
    x = im.reshape(B, C, nD, PS, nH2, 2, PS, nW2, 2, PS)
    x = x.transpose(0, 2, 4, 7, 8, 5, 1, 3, 6, 9)     # (b,d,h2,w2,wp,hp,c,pd,ph,pw)
    x = x.reshape(B * nD * nH2 * nW2, 4 * C * PS ** 3).astype(jnp.bfloat16)

    # TODO(synk): SwinTransformer3D window-attention blocks (SwinTransformerBlock3D,
    # relative position bias, cyclic shift) are not reproduced — their source was not
    # provided with the module; only the shape-determining embed+merge path is kept.

    y = pallas_vit_frontend(x, params["pe_w4"], params["pe_b4"],
                            params["pm_g"], params["pm_b"], params["pm_w"],
                            params["ln_g"], params["ln_b"])        # (M', d_model) f32
    d_model = y.shape[-1]
    return y.reshape(B, nD * nH2 * nW2, d_model)


# ----------------------------------------------------------------------------
# Deterministic parameter construction (shapes implied by __init__)
# ----------------------------------------------------------------------------

def trunc_normal(key, shape, std=0.02):
    return std * jax.random.truncated_normal(key, -2.0, 2.0, shape, jnp.float32)


def _expand_patch_weight(pe_w, pe_b):
    """Expand the (K, E) patch-embed matmul weight to a block-diagonal (4K, 4E)
    matrix so one matmul on merge-ordered (M', 4K) tokens directly emits the
    concatenated (M', 4E) PatchMerging input.  Done once at parameter build time."""
    K, E = pe_w.shape
    w4 = jnp.zeros((4 * K, 4 * E), pe_w.dtype)
    for g in range(4):
        w4 = w4.at[g * K:(g + 1) * K, g * E:(g + 1) * E].set(pe_w)
    b4 = jnp.tile(pe_b, (1, 4))
    return w4, b4


def make_params(key, channels, patch_size, d_model, n_stages=2):
    # NOTE: a real PyTorch Conv3d weight (E, C, kD, kH, kW) must be permuted to the
    # flattened (C*kD*kH*kW, E) layout and then expanded via _expand_patch_weight
    # before loading a checkpoint.
    E = d_model // (2 ** (n_stages - 1))    # swin embed_dim = d_model // 2^(len(depths)-1)
    K = channels * patch_size ** 3
    k1, k2 = jax.random.split(key, 2)
    pe_w = trunc_normal(k1, (K, E)).astype(jnp.bfloat16)
    pe_b = jnp.zeros((1, E), jnp.float32)
    pe_w4, pe_b4 = _expand_patch_weight(pe_w, pe_b)
    return {
        # patch-embed Conv3d expanded to block-diagonal (4K, 4E) bf16 weight + bias
        "pe_w4": pe_w4,
        "pe_b4": pe_b4,
        # patch merging: LayerNorm(4E) params + Linear(4E, 2E, bias=False)
        "pm_g": jnp.ones((1, 4 * E), jnp.float32),
        "pm_b": jnp.zeros((1, 4 * E), jnp.float32),
        "pm_w": trunc_normal(k2, (4 * E, 2 * E)).astype(jnp.bfloat16),
        # outer nn.LayerNorm(d_model): weight=1, bias=0 per init_weights
        "ln_g": jnp.ones((1, d_model), jnp.float32),
        "ln_b": jnp.zeros((1, d_model), jnp.float32),
    }


if __name__ == "__main__":
    B, C, D, H, W = 2, 4, 8, 8, 8
    patch_size = 2
    d_model = 32

    key = jax.random.PRNGKey(0)
    k_im, k_p = jax.random.split(key)
    im = jax.random.normal(k_im, (B, C, D, H, W), jnp.float32)
    params = make_params(k_p, C, patch_size, d_model)

    out = jax.block_until_ready(vision_transformer_forward(im, params, patch_size))

    # tokens: D' = 8/2 = 4, H'' = W'' = (8/2)/2 = 2  ->  N = 4*2*2 = 16
    assert out.shape == (B, 16, d_model), out.shape
    assert jnp.all(jnp.isfinite(out))
    print("KERNEL_OK")
</pallas_src>

<mosaic_0001>
module attributes {stable_mosaic.version = 11 : i64} {
  func.func @_fused_vit_frontend_kernel(%arg0: i32, %arg1: memref<16x128xbf16, #tpu.memory_space<vmem>>, %arg2: memref<128x64xbf16, #tpu.memory_space<vmem>>, %arg3: memref<1x64xf32, #tpu.memory_space<vmem>>, %arg4: memref<1x64xf32, #tpu.memory_space<vmem>>, %arg5: memref<1x64xf32, #tpu.memory_space<vmem>>, %arg6: memref<64x32xbf16, #tpu.memory_space<vmem>>, %arg7: memref<1x32xf32, #tpu.memory_space<vmem>>, %arg8: memref<1x32xf32, #tpu.memory_space<vmem>>, %arg9: memref<16x32xf32, #tpu.memory_space<vmem>>) attributes {dimension_semantics = [#tpu.dimension_semantics<parallel>], iteration_bounds = array<i64: 2>, scalar_prefetch = 0 : i64, scratch_operands = 0 : i64, tpu.core_type = #tpu.core_type<tc>, window_params = [{transform_indices = @transform_0, window_bounds = array<i64: 16, 128>}, {pipeline_mode = #tpu.pipeline_mode<synchronous>, transform_indices = @transform_1, window_bounds = array<i64: 128, 64>}, {pipeline_mode = #tpu.pipeline_mode<synchronous>, transform_indices = @transform_2, window_bounds = array<i64: 1, 64>}, {pipeline_mode = #tpu.pipeline_mode<synchronous>, transform_indices = @transform_3, window_bounds = array<i64: 1, 64>}, {pipeline_mode = #tpu.pipeline_mode<synchronous>, transform_indices = @transform_4, window_bounds = array<i64: 1, 64>}, {pipeline_mode = #tpu.pipeline_mode<synchronous>, transform_indices = @transform_5, window_bounds = array<i64: 64, 32>}, {pipeline_mode = #tpu.pipeline_mode<synchronous>, transform_indices = @transform_6, window_bounds = array<i64: 1, 32>}, {pipeline_mode = #tpu.pipeline_mode<synchronous>, transform_indices = @transform_7, window_bounds = array<i64: 1, 32>}, {transform_indices = @transform_8, window_bounds = array<i64: 16, 32>}]} {
    %c0 = arith.constant 0 : index
    %c0_0 = arith.constant 0 : index
    %0 = vector.load %arg1[%c0, %c0_0] : memref<16x128xbf16, #tpu.memory_space<vmem>>, vector<16x128xbf16>
    %c0_1 = arith.constant 0 : index
    %c0_2 = arith.constant 0 : index
    %1 = vector.load %arg2[%c0_1, %c0_2] : memref<128x64xbf16, #tpu.memory_space<vmem>>, vector<128x64xbf16>
    %cst = arith.constant dense<0.000000e+00> : vector<16x64xf32>
    %2 = tpu.matmul %0, %1, %cst {dimension_numbers = #tpu.dot_dimension_numbers<[1], [0], [0], [1], [0, 0, 1, 1], [], []>} : vector<16x128xbf16>, vector<128x64xbf16>, vector<16x64xf32> -> vector<16x64xf32>
    %c0_3 = arith.constant 0 : index
    %c0_4 = arith.constant 0 : index
    %3 = vector.load %arg3[%c0_3, %c0_4] : memref<1x64xf32, #tpu.memory_space<vmem>>, vector<1x64xf32>
    %4 = vector.broadcast %3 : vector<1x64xf32> to vector<16x64xf32>
    %5 = arith.addf %2, %4 : vector<16x64xf32>
    %cst_5 = arith.constant dense<0.000000e+00> : vector<16xf32>
    %6 = vector.multi_reduction <add>, %5, %cst_5 [1] : vector<16x64xf32> to vector<16xf32>
    %7 = vector.shape_cast %6 : vector<16xf32> to vector<16x1xf32>
    %cst_6 = arith.constant 6.400000e+01 : f32
    %8 = vector.broadcast %cst_6 : f32 to vector<16x1xf32>
    %9 = arith.divf %7, %8 : vector<16x1xf32>
    %10 = vector.broadcast %9 : vector<16x1xf32> to vector<16x64xf32>
    %11 = arith.subf %5, %10 : vector<16x64xf32>
    %12 = arith.mulf %11, %11 : vector<16x64xf32>
    %cst_7 = arith.constant dense<0.000000e+00> : vector<16xf32>
    %13 = vector.multi_reduction <add>, %12, %cst_7 [1] : vector<16x64xf32> to vector<16xf32>
    %14 = vector.shape_cast %13 : vector<16xf32> to vector<16x1xf32>
    %cst_8 = arith.constant 6.400000e+01 : f32
    %15 = vector.broadcast %cst_8 : f32 to vector<16x1xf32>
    %16 = arith.divf %14, %15 : vector<16x1xf32>
    %17 = vector.broadcast %9 : vector<16x1xf32> to vector<16x64xf32>
    %18 = arith.subf %5, %17 : vector<16x64xf32>
    %cst_9 = arith.constant 9.99999974E-6 : f32
    %19 = vector.broadcast %cst_9 : f32 to vector<16x1xf32>
    %20 = arith.addf %16, %19 : vector<16x1xf32>
    %21 = math.rsqrt %20 : vector<16x1xf32>
    %22 = vector.broadcast %21 : vector<16x1xf32> to vector<16x64xf32>
    %23 = arith.mulf %18, %22 : vector<16x64xf32>
    %c0_10 = arith.constant 0 : index
    %c0_11 = arith.constant 0 : index
    %24 = vector.load %arg4[%c0_10, %c0_11] : memref<1x64xf32, #tpu.memory_space<vmem>>, vector<1x64xf32>
    %25 = vector.broadcast %24 : vector<1x64xf32> to vector<16x64xf32>
    %26 = arith.mulf %23, %25 : vector<16x64xf32>
    %c0_12 = arith.constant 0 : index
    %c0_13 = arith.constant 0 : index
    %27 = vector.load %arg5[%c0_12, %c0_13] : memref<1x64xf32, #tpu.memory_space<vmem>>, vector<1x64xf32>
    %28 = vector.broadcast %27 : vector<1x64xf32> to vector<16x64xf32>
    %29 = arith.addf %26, %28 : vector<16x64xf32>
    %30 = arith.truncf %29 : vector<16x64xf32> to vector<16x64xbf16>
    %c0_14 = arith.constant 0 : index
    %c0_15 = arith.constant 0 : index
    %31 = vector.load %arg6[%c0_14, %c0_15] : memref<64x32xbf16, #tpu.memory_space<vmem>>, vector<64x32xbf16>
    %cst_16 = arith.constant dense<0.000000e+00> : vector<16x32xf32>
    %32 = tpu.matmul %30, %31, %cst_16 {dimension_numbers = #tpu.dot_dimension_numbers<[1], [0], [0], [1], [0, 0, 1, 1], [], []>} : vector<16x64xbf16>, vector<64x32xbf16>, vector<16x32xf32> -> vector<16x32xf32>
    %cst_17 = arith.constant dense<0.000000e+00> : vector<16xf32>
    %33 = vector.multi_reduction <add>, %32, %cst_17 [1] : vector<16x32xf32> to vector<16xf32>
    %34 = vector.shape_cast %33 : vector<16xf32> to vector<16x1xf32>
    %cst_18 = arith.constant 3.200000e+01 : f32
    %35 = vector.broadcast %cst_18 : f32 to vector<16x1xf32>
    %36 = arith.divf %34, %35 : vector<16x1xf32>
    %37 = vector.broadcast %36 : vector<16x1xf32> to vector<16x32xf32>
    %38 = arith.subf %32, %37 : vector<16x32xf32>
    %39 = arith.mulf %38, %38 : vector<16x32xf32>
    %cst_19 = arith.constant dense<0.000000e+00> : vector<16xf32>
    %40 = vector.multi_reduction <add>, %39, %cst_19 [1] : vector<16x32xf32> to vector<16xf32>
    %41 = vector.shape_cast %40 : vector<16xf32> to vector<16x1xf32>
    %cst_20 = arith.constant 3.200000e+01 : f32
    %42 = vector.broadcast %cst_20 : f32 to vector<16x1xf32>
    %43 = arith.divf %41, %42 : vector<16x1xf32>
    %44 = vector.broadcast %36 : vector<16x1xf32> to vector<16x32xf32>
    %45 = arith.subf %32, %44 : vector<16x32xf32>
    %cst_21 = arith.constant 9.99999974E-6 : f32
    %46 = vector.broadcast %cst_21 : f32 to vector<16x1xf32>
    %47 = arith.addf %43, %46 : vector<16x1xf32>
    %48 = math.rsqrt %47 : vector<16x1xf32>
    %49 = vector.broadcast %48 : vector<16x1xf32> to vector<16x32xf32>
    %50 = arith.mulf %45, %49 : vector<16x32xf32>
    %c0_22 = arith.constant 0 : index
    %c0_23 = arith.constant 0 : index
    %51 = vector.load %arg7[%c0_22, %c0_23] : memref<1x32xf32, #tpu.memory_space<vmem>>, vector<1x32xf32>
    %52 = vector.broadcast %51 : vector<1x32xf32> to vector<16x32xf32>
    %53 = arith.mulf %50, %52 : vector<16x32xf32>
    %c0_24 = arith.constant 0 : index
    %c0_25 = arith.constant 0 : index
    %54 = vector.load %arg8[%c0_24, %c0_25] : memref<1x32xf32, #tpu.memory_space<vmem>>, vector<1x32xf32>
    %55 = vector.broadcast %54 : vector<1x32xf32> to vector<16x32xf32>
    %56 = arith.addf %53, %55 : vector<16x32xf32>
    %c0_26 = arith.constant 0 : index
    %c0_27 = arith.constant 0 : index
    %57 = vector.load %arg9[%c0_26, %c0_27] : memref<16x32xf32, #tpu.memory_space<vmem>>, vector<16x32xf32>
    tpu.vector_store %arg9[%c0_26, %c0_27], %56 {strides = array<i32>} : memref<16x32xf32, #tpu.memory_space<vmem>>, vector<16x32xf32>,
    return
  }
  func.func @transform_0(%arg0: i32) -> (i32, i32) {
    %c0_i32 = arith.constant 0 : i32
    %c0_i32_0 = arith.constant 0 : i32
    return %arg0, %c0_i32 : i32, i32
  }
  func.func @transform_1(%arg0: i32) -> (i32, i32) {
    %c0_i32 = arith.constant 0 : i32
    %c0_i32_0 = arith.constant 0 : i32
    %c0_i32_1 = arith.constant 0 : i32
    return %c0_i32, %c0_i32_0 : i32, i32
  }
  func.func @transform_2(%arg0: i32) -> (i32, i32) {
    %c0_i32 = arith.constant 0 : i32
    %c0_i32_0 = arith.constant 0 : i32
    %c0_i32_1 = arith.constant 0 : i32
    return %c0_i32, %c0_i32_0 : i32, i32
  }
  func.func @transform_3(%arg0: i32) -> (i32, i32) {
    %c0_i32 = arith.constant 0 : i32
    %c0_i32_0 = arith.constant 0 : i32
    %c0_i32_1 = arith.constant 0 : i32
    return %c0_i32, %c0_i32_0 : i32, i32
  }
  func.func @transform_4(%arg0: i32) -> (i32, i32) {
    %c0_i32 = arith.constant 0 : i32
    %c0_i32_0 = arith.constant 0 : i32
    %c0_i32_1 = arith.constant 0 : i32
    return %c0_i32, %c0_i32_0 : i32, i32
  }
  func.func @transform_5(%arg0: i32) -> (i32, i32) {
    %c0_i32 = arith.constant 0 : i32
    %c0_i32_0 = arith.constant 0 : i32
    %c0_i32_1 = arith.constant 0 : i32
    return %c0_i32, %c0_i32_0 : i32, i32
  }
  func.func @transform_6(%arg0: i32) -> (i32, i32) {
    %c0_i32 = arith.constant 0 : i32
    %c0_i32_0 = arith.constant 0 : i32
    %c0_i32_1 = arith.constant 0 : i32
    return %c0_i32, %c0_i32_0 : i32, i32
  }
  func.func @transform_7(%arg0: i32) -> (i32, i32) {
    %c0_i32 = arith.constant 0 : i32
    %c0_i32_0 = arith.constant 0 : i32
    %c0_i32_1 = arith.constant 0 : i32
    return %c0_i32, %c0_i32_0 : i32, i32
  }
  func.func @transform_8(%arg0: i32) -> (i32, i32) {
    %c0_i32 = arith.constant 0 : i32
    %c0_i32_0 = arith.constant 0 : i32
    return %arg0, %c0_i32 : i32, i32
  }
}

</mosaic_0001>

<llo_original>
// kernel: vision_transformer_forward.1
$region0: #{vision_transformer_forward.1}
  #allocation0 [shape = 'u32[]', space=smem, size = 0x4, offset = 0x4, fixed_abs, tag = 'smem constant byte address 0x4 - core index']
  #allocation1 [shape = 'u32[144,128]{1,0:T(1,128)}', space=vmem, size = 0x12000, scoped, tag = 'internal scratch']
  %s0 = inlined_call_operand.vmem [shape: bf16[32,128], index: 0, kind: input, shape index: {}]
  %s1 = inlined_call_operand.vmem [shape: bf16[128,64], index: 1, kind: input, shape index: {}]
  %s2 = inlined_call_operand.vmem [shape: f32[1,64], index: 2, kind: input, shape index: {}]
  %s3 = inlined_call_operand.vmem [shape: f32[1,64], index: 3, kind: input, shape index: {}]
  %s4 = inlined_call_operand.vmem [shape: f32[1,64], index: 4, kind: input, shape index: {}]
  %s5 = inlined_call_operand.vmem [shape: bf16[64,32], index: 5, kind: input, shape index: {}]
  %s6 = inlined_call_operand.vmem [shape: f32[1,32], index: 6, kind: input, shape index: {}]
  %s7 = inlined_call_operand.vmem [shape: f32[1,32], index: 7, kind: input, shape index: {}]
  %s8 = inlined_call_operand.hbm [shape: f32[32,32], index: 8, kind: output, shape index: {}]
  %s9 = sld [smem:[#allocation0]]
  $region65: #{vision_transformer_forward.1} parent=0
    _
  %s11 = ssub.s32 1, %s9
  %s12 = scalar_select 0, %s11, %s9
  $region1: #{vision_transformer_forward.1} parent=0
    #allocation2 [shape = 'u8[16384]{0}', space=vmem, size = 0x4000, scoped, tag = 'output window, operand 0']
    #allocation3 [shape = 's32[2]{0}', space=sflag, size = 0x8, scoped, tag = 'scoped memory for vision_transformer_forward.1']
    %13 = vsyncpa [#allocation3], 0
    %s14 = scalar_lea.sflag [#allocation3], 1
    %15 = vsyncpa %s14, 0
    loop: start=0, step=1, limit=4
    $region2: #{vision_transformer_forward.1} parent=1 // loop_pre_header
      _
    $region3: #{vision_transformer_forward.1} parent=1 // loop_header
      %s17 = sphi 0, %s21
      %p18 = scmp.ge.s32.totalorder %s17, 4
      %s27 = sphi 0, %s29
      %s30 = sphi 0, %s27
      %s31 = sphi 0, %s30
      %s47 = sphi 0, %s31
      %s51 = sphi 0, %s51
      %s53 = sphi 0, %s51
      %s54 = sphi 0, %s53
      %s68 = sphi 0, %s54
      %s72 = sphi 0, %s72
      %s74 = sphi 0, %s72
      %s75 = sphi 0, %s74
      %s89 = sphi 0, %s75
      %s93 = sphi 0, %s93
      %s95 = sphi 0, %s93
      %s96 = sphi 0, %s95
      %s110 = sphi 0, %s96
      %s114 = sphi 0, %s114
      %s116 = sphi 0, %s114
      %s117 = sphi 0, %s116
      %s131 = sphi 0, %s117
      %s135 = sphi 0, %s135
      %s137 = sphi 0, %s135
      %s138 = sphi 0, %s137
      %s152 = sphi 0, %s138
      %s156 = sphi 0, %s156
      %s158 = sphi 0, %s156
      %s159 = sphi 0, %s158
      %s173 = sphi 0, %s159
      %s177 = sphi 0, %s177
      %s179 = sphi 0, %s177
      %s180 = sphi 0, %s179
      %s194 = sphi 0, %s180
      %s200 = sphi 0, %s202
      %s203 = sphi 0, %s200
      %s204 = sphi 0, %s203
      %s220 = sphi 0, %s204
    $region4: #{vision_transformer_forward.1} parent=1 // loop_header_branch
      %20 = sbr.rel (%p18) target = $region8
    $region5: #{vision_transformer_forward.1} parent=1 // loop_body
      %s22 = ssub.s32 %s17, 1
      %s23 = ssub.s32 %s17, 2
      %s24 = sadd.s32 %s17, 1
      %s25 = ssub.s32 %s17, %s24
      %p26 = scmp.eq.s32.totalorder %s25, 0
      %s28 = sadd.s32 %s27, 1
      %s29 = scalar_select %p26, %s27, %s28
      %p32 = pneg %p26
      %p33 = scmp.eq.s32.totalorder %s17, 1
      %p34 = por %p32, %p33
      %p35 = scmp.ne.s32.totalorder %s27, %s30
      %p36 = scmp.eq.s32.totalorder %s17, 0
      %p37 = por %p35, %p36
      %p38 = scmp.ne.s32.totalorder %s27, %s30
      %p39 = scmp.eq.s32.totalorder %s22, 1
      %p40 = por %p38, %p39
      %p41 = scmp.ne.s32.totalorder %s30, %s31
      %p42 = scmp.eq.s32.totalorder %s22, 0
      %p43 = por %p41, %p42
      %p44 = scmp.ne.s32.totalorder %s30, %s31
      %p45 = scmp.eq.s32.totalorder %s23, 1
      %p46 = por %p44, %p45
      %p48 = scmp.ne.s32.totalorder %s31, %s47
      %p49 = scmp.eq.s32.totalorder %s23, 0
      %p50 = por %p48, %p49
      %s52 = sadd.s32 %s51, 1
      %p55 = scmp.eq.s32.totalorder %s17, 1
      %p56 = scmp.ne.s32.totalorder %s51, %s53
      %p57 = scmp.eq.s32.totalorder %s17, 0
      %p58 = por %p56, %p57
      %p59 = scmp.ne.s32.totalorder %s51, %s53
      %p60 = scmp.eq.s32.totalorder %s22, 1
      %p61 = por %p59, %p60
      %p62 = scmp.ne.s32.totalorder %s53, %s54
      %p63 = scmp.eq.s32.totalorder %s22, 0
      %p64 = por %p62, %p63
      %p65 = scmp.ne.s32.totalorder %s53, %s54
      %p66 = scmp.eq.s32.totalorder %s23, 1
      %p67 = por %p65, %p66
      %p69 = scmp.ne.s32.totalorder %s54, %s68
      %p70 = scmp.eq.s32.totalorder %s23, 0
      %p71 = por %p69, %p70
      %s73 = sadd.s32 %s72, 1
      %p76 = scmp.eq.s32.totalorder %s17, 1
      %p77 = scmp.ne.s32.totalorder %s72, %s74
      %p78 = scmp.eq.s32.totalorder %s17, 0
      %p79 = por %p77, %p78
      %p80 = scmp.ne.s32.totalorder %s72, %s74
      %p81 = scmp.eq.s32.totalorder %s22, 1
      %p82 = por %p80, %p81
      %p83 = scmp.ne.s32.totalorder %s74, %s75
      %p84 = scmp.eq.s32.totalorder %s22, 0
      %p85 = por %p83, %p84
      %p86 = scmp.ne.s32.totalorder %s74, %s75
      %p87 = scmp.eq.s32.totalorder %s23, 1
      %p88 = por %p86, %p87
      %p90 = scmp.ne.s32.totalorder %s75, %s89
      %p91 = scmp.eq.s32.totalorder %s23, 0
      %p92 = por %p90, %p91
      %s94 = sadd.s32 %s93, 1
      %p97 = scmp.eq.s32.totalorder %s17, 1
      %p98 = scmp.ne.s32.totalorder %s93, %s95
      %p99 = scmp.eq.s32.totalorder %s17, 0
      %p100 = por %p98, %p99
      %p101 = scmp.ne.s32.totalorder %s93, %s95
      %p102 = scmp.eq.s32.totalorder %s22, 1
      %p103 = por %p101, %p102
      %p104 = scmp.ne.s32.totalorder %s95, %s96
      %p105 = scmp.eq.s32.totalorder %s22, 0
      %p106 = por %p104, %p105
      %p107 = scmp.ne.s32.totalorder %s95, %s96
      %p108 = scmp.eq.s32.totalorder %s23, 1
      %p109 = por %p107, %p108
      %p111 = scmp.ne.s32.totalorder %s96, %s110
      %p112 = scmp.eq.s32.totalorder %s23, 0
      %p113 = por %p111, %p112
      %s115 = sadd.s32 %s114, 1
      %p118 = scmp.eq.s32.totalorder %s17, 1
      %p119 = scmp.ne.s32.totalorder %s114, %s116
      %p120 = scmp.eq.s32.totalorder %s17, 0
      %p121 = por %p119, %p120
      %p122 = scmp.ne.s32.totalorder %s114, %s116
      %p123 = scmp.eq.s32.totalorder %s22, 1
      %p124 = por %p122, %p123
      %p125 = scmp.ne.s32.totalorder %s116, %s117
      %p126 = scmp.eq.s32.totalorder %s22, 0
      %p127 = por %p125, %p126
      %p128 = scmp.ne.s32.totalorder %s116, %s117
      %p129 = scmp.eq.s32.totalorder %s23, 1
      %p130 = por %p128, %p129
      %p132 = scmp.ne.s32.totalorder %s117, %s131
      %p133 = scmp.eq.s32.totalorder %s23, 0
      %p134 = por %p132, %p133
      %s136 = sadd.s32 %s135, 1
      %p139 = scmp.eq.s32.totalorder %s17, 1
      %p140 = scmp.ne.s32.totalorder %s135, %s137
      %p141 = scmp.eq.s32.totalorder %s17, 0
      %p142 = por %p140, %p141
      %p143 = scmp.ne.s32.totalorder %s135, %s137
      %p144 = scmp.eq.s32.totalorder %s22, 1
      %p145 = por %p143, %p144
      %p146 = scmp.ne.s32.totalorder %s137, %s138
      %p147 = scmp.eq.s32.totalorder %s22, 0
      %p148 = por %p146, %p147
      %p149 = scmp.ne.s32.totalorder %s137, %s138
      %p150 = scmp.eq.s32.totalorder %s23, 1
      %p151 = por %p149, %p150
      %p153 = scmp.ne.s32.totalorder %s138, %s152
      %p154 = scmp.eq.s32.totalorder %s23, 0
      %p155 = por %p153, %p154
      %s157 = sadd.s32 %s156, 1
      %p160 = scmp.eq.s32.totalorder %s17, 1
      %p161 = scmp.ne.s32.totalorder %s156, %s158
      %p162 = scmp.eq.s32.totalorder %s17, 0
      %p163 = por %p161, %p162
      %p164 = scmp.ne.s32.totalorder %s156, %s158
      %p165 = scmp.eq.s32.totalorder %s22, 1
      %p166 = por %p164, %p165
      %p167 = scmp.ne.s32.totalorder %s158, %s159
      %p168 = scmp.eq.s32.totalorder %s22, 0
      %p169 = por %p167, %p168
      %p170 = scmp.ne.s32.totalorder %s158, %s159
      %p171 = scmp.eq.s32.totalorder %s23, 1
      %p172 = por %p170, %p171
      %p174 = scmp.ne.s32.totalorder %s159, %s173
      %p175 = scmp.eq.s32.totalorder %s23, 0
      %p176 = por %p174, %p175
      %s178 = sadd.s32 %s177, 1
      %p181 = scmp.eq.s32.totalorder %s17, 1
      %p182 = scmp.ne.s32.totalorder %s177, %s179
      %p183 = scmp.eq.s32.totalorder %s17, 0
      %p184 = por %p182, %p183
      %p185 = scmp.ne.s32.totalorder %s177, %s179
      %p186 = scmp.eq.s32.totalorder %s22, 1
      %p187 = por %p185, %p186
      %p188 = scmp.ne.s32.totalorder %s179, %s180
      %p189 = scmp.eq.s32.totalorder %s22, 0
      %p190 = por %p188, %p189
      %p191 = scmp.ne.s32.totalorder %s179, %s180
      %p192 = scmp.eq.s32.totalorder %s23, 1
      %p193 = por %p191, %p192
      %p195 = scmp.ne.s32.totalorder %s180, %s194
      %p196 = scmp.eq.s32.totalorder %s23, 0
      %p197 = por %p195, %p196
      %s198 = ssub.s32 %s17, %s24
      %p199 = scmp.eq.s32.totalorder %s198, 0
      %s201 = sadd.s32 %s200, 1
      %s202 = scalar_select %p199, %s200, %s201
      %p205 = pneg %p199
      %p206 = scmp.eq.s32.totalorder %s17, 1
      %p207 = por %p205, %p206
      %p208 = scmp.ne.s32.totalorder %s200, %s203
      %p209 = scmp.eq.s32.totalorder %s17, 0
      %p210 = por %p208, %p209
      %p211 = scmp.ne.s32.totalorder %s200, %s203
      %p212 = scmp.eq.s32.totalorder %s22, 1
      %p213 = por %p211, %p212
      %p214 = scmp.ne.s32.totalorder %s203, %s204
      %p215 = scmp.eq.s32.totalorder %s22, 0
      %p216 = por %p214, %p215
      %p217 = scmp.ne.s32.totalorder %s203, %s204
      %p218 = scmp.eq.s32.totalorder %s23, 1
      %p219 = por %p217, %p218
      %p221 = scmp.ne.s32.totalorder %s204, %s220
      %p222 = scmp.eq.s32.totalorder %s23, 0
      %p223 = por %p221, %p222
      %p224 = scmp.le.s32.totalorder 1, %s17
      %p225 = scmp.lt.s32.totalorder %s17, 3
      %p226 = pnand %p224, %p225
      %p227 = pneg %p226
      // Predicated region
      $region9: #{vision_transformer_forward.1} parent=5 // pred_check
        _
      $region10: #{vision_transformer_forward.1} parent=5 // pred_check_branch
        %229 = sbr.rel (%p226) target = $region12
      $region11: #{vision_transformer_forward.1} parent=5 // pred_region
        %s230 = ssub.s32 %s17, 1
        // Predicated region
        $region13: #{vision_transformer_forward.1} parent=11 // pred_check
          %p231 = pneg %p64
        $region14: #{vision_transformer_forward.1} parent=11 // pred_check_branch
          %233 = sbr.rel (%p231) target = $region16
        $region15: #{vision_transformer_forward.1} parent=11 // pred_region
          _
        $region16: #{vision_transformer_forward.1} parent=11 // pred_fallthru
          _
        // Predicated region
        $region17: #{vision_transformer_forward.1} parent=11 // pred_check
          %p234 = pneg %p85
        $region18: #{vision_transformer_forward.1} parent=11 // pred_check_branch
          %236 = sbr.rel (%p234) target = $region20
        $region19: #{vision_transformer_forward.1} parent=11 // pred_region
          _
        $region20: #{vision_transformer_forward.1} parent=11 // pred_fallthru
          _
        // Predicated region
        $region21: #{vision_transformer_forward.1} parent=11 // pred_check
          %p237 = pneg %p106
        $region22: #{vision_transformer_forward.1} parent=11 // pred_check_branch
          %239 = sbr.rel (%p237) target = $region24
        $region23: #{vision_transformer_forward.1} parent=11 // pred_region
          _
        $region24: #{vision_transformer_forward.1} parent=11 // pred_fallthru
          _
        // Predicated region
        $region25: #{vision_transformer_forward.1} parent=11 // pred_check
          %p240 = pneg %p127
        $region26: #{vision_transformer_forward.1} parent=11 // pred_check_branch
          %242 = sbr.rel (%p240) target = $region28
        $region27: #{vision_transformer_forward.1} parent=11 // pred_region
          _
        $region28: #{vision_transformer_forward.1} parent=11 // pred_fallthru
          _
        // Predicated region
        $region29: #{vision_transformer_forward.1} parent=11 // pred_check
          %p243 = pneg %p148
        $region30: #{vision_transformer_forward.1} parent=11 // pred_check_branch
          %245 = sbr.rel (%p243) target = $region32
        $region31: #{vision_transformer_forward.1} parent=11 // pred_region
          _
        $region32: #{vision_transformer_forward.1} parent=11 // pred_fallthru
          _
        // Predicated region
        $region33: #{vision_transformer_forward.1} parent=11 // pred_check
          %p246 = pneg %p169
        $region34: #{vision_transformer_forward.1} parent=11 // pred_check_branch
          %248 = sbr.rel (%p246) target = $region36
        $region35: #{vision_transformer_forward.1} parent=11 // pred_region
          _
        $region36: #{vision_transformer_forward.1} parent=11 // pred_fallthru
          _
        // Predicated region
        $region37: #{vision_transformer_forward.1} parent=11 // pred_check
          %p249 = pneg %p190
        $region38: #{vision_transformer_forward.1} parent=11 // pred_check_branch
          %251 = sbr.rel (%p249) target = $region40
        $region39: #{vision_transformer_forward.1} parent=11 // pred_region
          _
        $region40: #{vision_transformer_forward.1} parent=11 // pred_fallthru
          _
      $region12: #{vision_transformer_forward.1} parent=5 // pred_fallthru
        _
      %p252 = scmp.lt.s32.totalorder %s17, 2
      // Predicated region
      $region41: #{vision_transformer_forward.1} parent=5 // pred_check
        %p253 = pneg %p252
      $region42: #{vision_transformer_forward.1} parent=5 // pred_check_branch
        %255 = sbr.rel (%p253) target = $region44
      $region43: #{vision_transformer_forward.1} parent=5 // pred_region
        // Predicated region
        $region45: #{vision_transformer_forward.1} parent=43 // pred_check
          %p256 = pneg %p37
        $region46: #{vision_transformer_forward.1} parent=43 // pred_check_branch
          %258 = sbr.rel (%p256) target = $region48
        $region47: #{vision_transformer_forward.1} parent=43 // pred_region
          %s259 = smul.u32 2, %s17
          %p260 = scmp.lt.s32.totalorder %s259, 3
          %s261 = scalar_select %p260, %s259, 3
          %s262 = smul.addr %s261, 4
          %s263 = scalar_lea.vmem %s0, %s262
          %s264 = smul.u32 2, %s17
        $region48: #{vision_transformer_forward.1} parent=43 // pred_fallthru
          _
      $region44: #{vision_transformer_forward.1} parent=5 // pred_fallthru
        _
      %p265 = scmp.le.s32.totalorder 1, %s17
      %p266 = scmp.lt.s32.totalorder %s17, 3
      %p267 = pnand %p265, %p266
      %p268 = pneg %p267
      // Predicated region
      $region49: #{vision_transformer_forward.1} parent=5 // pred_check
        _
      $region50: #{vision_transformer_forward.1} parent=5 // pred_check_branch
        %270 = sbr.rel (%p267) target = $region52
      $region51: #{vision_transformer_forward.1} parent=5 // pred_region
        %s271 = ssub.s32 %s17, 1
        %s272 = smul.u32 2, %s22
        %p273 = scmp.lt.s32.totalorder %s272, 3
        %s274 = scalar_select %p273, %s272, 3
        %s275 = smul.addr %s274, 4
        %s276 = scalar_lea.vmem %s0, %s275
        %p277 = pneg %p43
        %p278 = pneg %p40
        %p279 = pneg %p64
        %p280 = pneg %p61
        %p281 = pneg %p85
        %p282 = pneg %p82
        %p283 = pneg %p106
        %p284 = pneg %p103
        %p285 = pneg %p127
        %p286 = pneg %p124
        %p287 = pneg %p148
        %p288 = pneg %p145
        %p289 = pneg %p169
        %p290 = pneg %p166
        %p291 = pneg %p190
        %p292 = pneg %p187
        %p293 = pneg %p216
        %p294 = pneg %p213
        %s295 = sand.u32 %s203, 1
        %s296 = scalar_lea.sflag [#allocation3], %s295
        %s297 = sand.u32 %s203, 1
        %s298 = smul.addr %s297, 16
        %s299 = scalar_lea.vmem [#allocation2], %s298
        %s300 = smul.u32 2, %s22
        %p301 = scmp.lt.s32.totalorder %s300, 3
        %s302 = scalar_select %p301, %s300, 3
        %s303 = smul.addr %s302, 4
        %s304 = scalar_lea.vmem %s0, %s303
        %s305 = smul.u32 2, %s22
        %s306 = smul.u32 2, %s22
        %v308 = vld [vmem:[%s304] sm:$0xf]
        %v309 = vld [vmem:[%s304 + $0x4] sm:$0xf]
        %v310 = vld [vmem:[%s1] sm:$0xf]
        %v311 = vld [vmem:[%s1 + $0x4] sm:$0xf]
        %v312 = vld [vmem:[%s1 + $0x8] sm:$0xf]
        %v313 = vld [vmem:[%s1 + $0xc] sm:$0xf]
        %v314 = vld [vmem:[%s1 + $0x10] sm:$0xf]
        %v315 = vld [vmem:[%s1 + $0x14] sm:$0xf]
        %v316 = vld [vmem:[%s1 + $0x18] sm:$0xf]
        %v317 = vld [vmem:[%s1 + $0x1c] sm:$0xf]
        %v318 = vld [vmem:[%s1 + $0x20] sm:$0xf]
        %v319 = vld [vmem:[%s1 + $0x24] sm:$0xf]
        %v320 = vld [vmem:[%s1 + $0x28] sm:$0xf]
        %v321 = vld [vmem:[%s1 + $0x2c] sm:$0xf]
        %v322 = vld [vmem:[%s1 + $0x30] sm:$0xf]
        %v323 = vld [vmem:[%s1 + $0x34] sm:$0xf]
        %v324 = vld [vmem:[%s1 + $0x38] sm:$0xf]
        %v325 = vld [vmem:[%s1 + $0x3c] sm:$0xf]
        %v326 = vld [vmem:[%s2] sm:$0x1]
        %v328 = vlaneseq
        %v329 = vshrl.u32 %v328, 7
        %v330 = vsub.s32 0, %v329
        %v331 = vrot.slane %v326, %v330
        %v335 = vunpack.c.l.b16 %v308
        %v336 = vunpack.c.l.b16 %v309
        %v337 = vpack.c.b16 %v336, %v335
        %v355 = vunpack.c.l.b16 %v310
        %v356 = vunpack.c.l.b16 %v311
        %v357 = vunpack.c.l.b16 %v312
        %v358 = vunpack.c.l.b16 %v313
        %v359 = vunpack.c.l.b16 %v314
        %v360 = vunpack.c.l.b16 %v315
        %v361 = vunpack.c.l.b16 %v316
        %v362 = vunpack.c.l.b16 %v317
        %v363 = vunpack.c.l.b16 %v318
        %v364 = vunpack.c.l.b16 %v319
        %v365 = vunpack.c.l.b16 %v320
        %v366 = vunpack.c.l.b16 %v321
        %v367 = vunpack.c.l.b16 %v322
        %v368 = vunpack.c.l.b16 %v323
        %v369 = vunpack.c.l.b16 %v324
        %v370 = vunpack.c.l.b16 %v325
        %v371 = vpack.c.b16 %v356, %v355
        %v372 = vpack.c.b16 %v358, %v357
        %v373 = vpack.c.b16 %v360, %v359
        %v374 = vpack.c.b16 %v362, %v361
        %v375 = vpack.c.b16 %v364, %v363
        %v376 = vpack.c.b16 %v366, %v365
        %v377 = vpack.c.b16 %v368, %v367
        %v378 = vpack.c.b16 %v370, %v369
        %387 = vmatprep.subr.bf16.mxu0 0
        %388 = vmatpush1.bf16.msra.mxu0 %v378
        %389 = vmatprep.subr.bf16.mxu0 0
        %390 = vmatpush1.bf16.msra.mxu0 %v377
        %391 = vmatprep.subr.bf16.mxu0 0
        %392 = vmatpush1.bf16.msra.mxu0 %v376
        %393 = vmatprep.subr.bf16.mxu0 0
        %394 = vmatpush1.bf16.msra.mxu0 %v375
        %395 = vmatprep.subr.bf16.mxu0 0
        %396 = vmatpush1.bf16.msra.mxu0 %v374
        %397 = vmatprep.subr.bf16.mxu0 0
        %398 = vmatpush1.bf16.msra.mxu0 %v373
        %399 = vmatprep.subr.bf16.mxu0 0
        %400 = vmatpush1.bf16.msra.mxu0 %v372
        %401 = vmatprep.subr.bf16.mxu0 0
        %402 = vmatpush1.bf16.msra.mxu0 %v371
        %403 = vmatprep.subr.bf16.mxu0 0
        %404 = vmatpush2.bf16.msra.mxu0 0
        %405 = vmatprep.subr.bf16.mxu0 0
        %406 = vmatpush2.bf16.msra.mxu0 0
        %407 = vmatprep.subr.bf16.mxu0 0
        %408 = vmatpush2.bf16.msra.mxu0 0
        %409 = vmatprep.subr.bf16.mxu0 0
        %410 = vmatpush2.bf16.msra.mxu0 0
        %411 = vmatprep.subr.bf16.mxu0 0
        %412 = vmatpush2.bf16.msra.mxu0 0
        %413 = vmatprep.subr.bf16.mxu0 0
        %414 = vmatpush2.bf16.msra.mxu0 0
        %415 = vmatprep.subr.bf16.mxu0 0
        %416 = vmatpush2.bf16.msra.mxu0 0
        %417 = vmatprep.subr.bf16.mxu0 0
        %418 = vmatpush2.bf16.msra.mxu0 0
        %419 = vmatprep.mubr.bf16.mxu0 0
        %420 = vmatmul.mubr.bf16.gmra.mxu0 %v337
        %v421 = vpop.f32.mrf.mxu0
        %v422 = vadd.f32 %v331, %v421
        %v423 = vpop.f32.mrf.mxu0
        %v424 = vpop.f32.mrf.mxu0
        %v425 = vadd.f32 %v331, %v424
        %v426 = vpop.f32.mrf.mxu0
        %427 = vdwg.mxu0
        %vm428 = vcmask 523264
        %v429 = vsel %vm428, %v422, 0.0
        %430 = vadd.xlane.f32.xlu0 %v429
        %v431 = vpop.xlane.xlu0 %430
        %v432 = vsel %vm428, %v425, 0.0
        %433 = vadd.xlane.f32.xlu0 %v432
        %v434 = vpop.xlane.xlu0 %433
        %v435 = vrcp.pop 64.0
        %v436 = vmul.f32 %v431, %v435
        %v437 = vmul.f32 %v434, %v435
        %v438 = vsub.f32 %v422, %v436
        %v439 = vsub.f32 %v425, %v437
        %v440 = vmul.f32 %v438, %v438
        %v441 = vmul.f32 %v439, %v439
        %v442 = vsel %vm428, %v440, 0.0
        %443 = vadd.xlane.f32.xlu0 %v442
        %v444 = vpop.xlane.xlu0 %443
        %v445 = vsel %vm428, %v441, 0.0
        %446 = vadd.xlane.f32.xlu0 %v445
        %v447 = vpop.xlane.xlu0 %446
        %v448 = vmul.f32 %v444, %v435
        %v449 = vmul.f32 %v447, %v435
        %v450 = vadd.f32 %v448, 1e-05
        %v451 = vadd.f32 %v449, 1e-05
        %v452 = vrsqrt.pop %v450
        %v453 = vrsqrt.pop %v451
        %v454 = vmul.f32 %v438, %v452
        %v455 = vmul.f32 %v439, %v453
        %v456 = vld [vmem:[%s3] sm:$0x1]
        %v458 = vlaneseq
        %v459 = vshrl.u32 %v458, 7
        %v460 = vsub.s32 0, %v459
        %v461 = vrot.slane %v456, %v460
        %v463 = vmul.f32 %v454, %v461
        %v464 = vmul.f32 %v455, %v461
        %v465 = vld [vmem:[%s4] sm:$0x1]
        %v467 = vlaneseq
        %v468 = vshrl.u32 %v467, 7
        %v469 = vsub.s32 0, %v468
        %v470 = vrot.slane %v465, %v469
        %v472 = vadd.f32 %v463, %v470
        %v473 = vadd.f32 %v464, %v470
        %v474 = vpack.c.bf16 %v473, %v472
        %v475 = vld [vmem:[%s5] sm:$0xf]
        %v476 = vld [vmem:[%s5 + $0x4] sm:$0xf]
        %v477 = vld [vmem:[%s5 + $0x8] sm:$0xf]
        %v478 = vld [vmem:[%s5 + $0xc] sm:$0xf]
        %v479 = vld [vmem:[%s5 + $0x10] sm:$0xf]
        %v480 = vld [vmem:[%s5 + $0x14] sm:$0xf]
        %v481 = vld [vmem:[%s5 + $0x18] sm:$0xf]
        %v482 = vld [vmem:[%s5 + $0x1c] sm:$0xf]
        %v491 = vunpack.c.l.b16 %v475
        %v492 = vunpack.c.l.b16 %v476
        %v493 = vunpack.c.l.b16 %v477
        %v494 = vunpack.c.l.b16 %v478
        %v495 = vunpack.c.l.b16 %v479
        %v496 = vunpack.c.l.b16 %v480
        %v497 = vunpack.c.l.b16 %v481
        %v498 = vunpack.c.l.b16 %v482
        %v499 = vpack.c.b16 %v492, %v491
        %v500 = vpack.c.b16 %v494, %v493
        %v501 = vpack.c.b16 %v496, %v495
        %v502 = vpack.c.b16 %v498, %v497
        %v508 = vsel %vm428, %v474, 0
        %510 = vmatprep.subr.bf16.mxu0 0
        %511 = vmatpush1.bf16.msra.mxu0 0
        %512 = vmatprep.subr.bf16.mxu0 0
        %513 = vmatpush1.bf16.msra.mxu0 0
        %514 = vmatprep.subr.bf16.mxu0 0
        %515 = vmatpush1.bf16.msra.mxu0 0
        %516 = vmatprep.subr.bf16.mxu0 0
        %517 = vmatpush1.bf16.msra.mxu0 0
        %518 = vmatprep.subr.bf16.mxu0 0
        %519 = vmatpush1.bf16.msra.mxu0 %v502
        %520 = vmatprep.subr.bf16.mxu0 0
        %521 = vmatpush1.bf16.msra.mxu0 %v501
        %522 = vmatprep.subr.bf16.mxu0 0
        %523 = vmatpush1.bf16.msra.mxu0 %v500
        %524 = vmatprep.subr.bf16.mxu0 0
        %525 = vmatpush1.bf16.msra.mxu0 %v499
        %526 = vmatprep.subr.bf16.mxu0 0
        %527 = vmatpush2.bf16.msra.mxu0 0
        %528 = vmatprep.subr.bf16.mxu0 0
        %529 = vmatpush2.bf16.msra.mxu0 0
        %530 = vmatprep.subr.bf16.mxu0 0
        %531 = vmatpush2.bf16.msra.mxu0 0
        %532 = vmatprep.subr.bf16.mxu0 0
        %533 = vmatpush2.bf16.msra.mxu0 0
        %534 = vmatprep.subr.bf16.mxu0 0
        %535 = vmatpush2.bf16.msra.mxu0 0
        %536 = vmatprep.subr.bf16.mxu0 0
        %537 = vmatpush2.bf16.msra.mxu0 0
        %538 = vmatprep.subr.bf16.mxu0 0
        %539 = vmatpush2.bf16.msra.mxu0 0
        %540 = vmatprep.subr.bf16.mxu0 0
        %541 = vmatpush2.bf16.msra.mxu0 0
        %542 = vmatprep.mubr.bf16.mxu0 0
        %543 = vmatmul.mubr.bf16.gmra.mxu0 %v508
        %v544 = vpop.f32.mrf.mxu0
        %v545 = vadd.f32 0.0, %v544
        %v546 = vpop.f32.mrf.mxu0
        %v547 = vpop.f32.mrf.mxu0
        %v548 = vadd.f32 0.0, %v547
        %v549 = vpop.f32.mrf.mxu0
        %550 = vdwg.mxu0
        %vm551 = vcmask 261120
        %v552 = vsel %vm551, %v545, 0.0
        %553 = vadd.xlane.f32.xlu0 %v552
        %v554 = vpop.xlane.xlu0 %553
        %v555 = vsel %vm551, %v548, 0.0
        %556 = vadd.xlane.f32.xlu0 %v555
        %v557 = vpop.xlane.xlu0 %556
        %v558 = vrcp.pop 32.0
        %v559 = vmul.f32 %v554, %v558
        %v560 = vmul.f32 %v557, %v558
        %v561 = vsub.f32 %v545, %v559
        %v562 = vsub.f32 %v548, %v560
        %v563 = vmul.f32 %v561, %v561
        %v564 = vmul.f32 %v562, %v562
        %v565 = vsel %vm551, %v563, 0.0
        %566 = vadd.xlane.f32.xlu0 %v565
        %v567 = vpop.xlane.xlu0 %566
        %v568 = vsel %vm551, %v564, 0.0
        %569 = vadd.xlane.f32.xlu0 %v568
        %v570 = vpop.xlane.xlu0 %569
        %v571 = vmul.f32 %v567, %v558
        %v572 = vmul.f32 %v570, %v558
        %v573 = vadd.f32 %v571, 1e-05
        %v574 = vadd.f32 %v572, 1e-05
        %v575 = vrsqrt.pop %v573
        %v576 = vrsqrt.pop %v574
        %v577 = vmul.f32 %v561, %v575
        %v578 = vmul.f32 %v562, %v576
        %v579 = vld [vmem:[%s6] sm:$0x1]
        %v581 = vlaneseq
        %v582 = vshrl.u32 %v581, 7
        %v583 = vsub.s32 0, %v582
        %v584 = vrot.slane %v579, %v583
        %v586 = vmul.f32 %v577, %v584
        %v587 = vmul.f32 %v578, %v584
        %v588 = vld [vmem:[%s7] sm:$0x1]
        %v590 = vlaneseq
        %v591 = vshrl.u32 %v590, 7
        %v592 = vsub.s32 0, %v591
        %v593 = vrot.slane %v588, %v592
        %v595 = vadd.f32 %v586, %v593
        %v596 = vadd.f32 %v587, %v593
        %597 = vst.msk [vmem:[%s299] sm:$0xff] %vm551, %v595
        %598 = vst.msk [vmem:[%s299 + $0x8] sm:$0xff] %vm551, %v596
        %s599 = sand.u32 %s203, 1
        %s600 = scalar_lea.sflag [#allocation3], %s599
        %s601 = sand.u32 %s203, 1
        %s602 = smul.addr %s601, 16
        %s603 = scalar_lea.vmem [#allocation2], %s602
        // Predicated region
        $region53: #{vision_transformer_forward.1} parent=51 // pred_check
          %p604 = pneg %p213
        $region54: #{vision_transformer_forward.1} parent=51 // pred_check_branch
          %606 = sbr.rel (%p604) target = $region56
        $region55: #{vision_transformer_forward.1} parent=51 // pred_region
          %s607 = smul.u32 2, %s22
          %s609 = ssub.s32 256, 256
          %610 = vsyncadd %s600, %s609
          %s611 = smul.addr %s607, 128
          %s612 = scalar_lea.hbm %s8, %s611
          %s613 = sshll.u32 %s603, 4
          %s614 = int_to_ptr.vmem [resolvable:$true] %s613
          %619 = dma.vmem_to_hbm [thread:$0]  %s614, 256, %s612, %s600, 128, 128, 8
        $region56: #{vision_transformer_forward.1} parent=51 // pred_fallthru
          _
      $region52: #{vision_transformer_forward.1} parent=5 // pred_fallthru
        _
      %p620 = scmp.le.s32.totalorder 2, %s17
      // Predicated region
      $region57: #{vision_transformer_forward.1} parent=5 // pred_check
        %p621 = pneg %p620
      $region58: #{vision_transformer_forward.1} parent=5 // pred_check_branch
        %623 = sbr.rel (%p621) target = $region60
      $region59: #{vision_transformer_forward.1} parent=5 // pred_region
        %s624 = ssub.s32 %s17, 2
        // Predicated region
        $region61: #{vision_transformer_forward.1} parent=59 // pred_check
          %p625 = pneg %p219
        $region62: #{vision_transformer_forward.1} parent=59 // pred_check_branch
          %627 = sbr.rel (%p625) target = $region64
        $region63: #{vision_transformer_forward.1} parent=59 // pred_region
          %s628 = sand.u32 %s204, 1
          %s629 = scalar_lea.sflag [#allocation3], %s628
          %s630 = sand.u32 %s204, 1
          %s631 = smul.addr %s630, 16
          %s632 = scalar_lea.vmem [#allocation2], %s631
          %633 = dma.done %s629, 256
        $region64: #{vision_transformer_forward.1} parent=59 // pred_fallthru
          _
      $region60: #{vision_transformer_forward.1} parent=5 // pred_fallthru
        _
    $region6: #{vision_transformer_forward.1} parent=1 // loop_footer
      %s21 = sadd.s32 1, %s17
    $region7: #{vision_transformer_forward.1} parent=1 // loop_footer_branch
      %16 = sbr.rel target = $region3
    $region8: #{vision_transformer_forward.1} parent=1 // loop_exit
      _
    %634 = vsyncpa [#allocation3], 1
    %s635 = scalar_lea.sflag [#allocation3], 1
    %636 = vsyncpa %s635, 1

</llo_original>
